<compile_context>
chip_gen: v7x
topology: tpu7x:2x2x1
jax: 0.10.0
libtpu: 0.0.40
codegen_flags: <defaults>
</compile_context>

<pallas_src>
import jax
import jax.numpy as jnp
import numpy as np
from jax.experimental import pallas as pl
from jax.experimental.pallas import tpu as pltpu


def _choose_bn(N, C, HW, itemsize):
    """Samples per grid step.

    Rows per block (bn*C) must satisfy the (8, .) sublane rule (multiple of 8,
    or the full flattened extent).  Target <= ~2 MiB of x per block so that
    double-buffered in+out (~4x block bytes) stays well inside the default
    scoped VMEM on all generations (16 MiB on v5e, 32 MiB on v6e/v7x).  Among
    legal, fitting choices prefer >=2 grid steps (v7x has two TensorCores),
    then the largest block (amortizes the ~0.35 us per-grid-step overhead).
    """
    legal = [bn for bn in range(1, N + 1)
             if N % bn == 0 and ((bn * C) % 8 == 0 or bn * C == N * C)]
    cap = 2 * 1024 * 1024
    fitting = [bn for bn in legal if bn * C * HW * itemsize <= cap] or [min(legal)]
    multi = [bn for bn in fitting if N // bn >= 2]
    return max(multi or fitting)


def eca_pallas(x_nchw, w_eca, k_size=5):
    N, C, H, W = x_nchw.shape
    HW = H * W
    pad = (k_size - 1) // 2
    dtype = x_nchw.dtype

    # Sublane-dense flattened view: row r = (sample n, channel c), spatial on
    # the lane axis.  NCHW is contiguous so this reshape is a free view.
    x2 = x_nchw.reshape(N * C, HW)

    # Per-tap (weight * channel-validity) column vectors:
    #   wm[t, r, 0] = w[t]  if 0 <= (r % C) + (t - pad) < C  else 0
    # This both applies the conv weight and zeroes taps that would cross a
    # sample/channel boundary after the circular roll.  O(k*N*C) — tiny.
    ch = jnp.arange(N * C, dtype=jnp.int32) % C
    tap = jnp.arange(k_size, dtype=jnp.int32)
    shifted = ch[None, :] + tap[:, None] - pad                      # (k, N*C)
    valid = ((shifted >= 0) & (shifted < C)).astype(jnp.float32)
    wm = (w_eca.astype(jnp.float32)[:, None] * valid)[..., None]    # (k, N*C, 1)

    bn = _choose_bn(N, C, HW, dtype.itemsize)
    R = bn * C                                                      # rows per block

    def eca_kernel(x_ref, wm_ref, o_ref):
        # x_ref : (R, HW) block of (sample, channel) rows, native dtype
        # wm_ref: (k, R, 1) per-tap weight*mask columns (f32)
        # o_ref : (R, HW)
        xf = x_ref[...].astype(jnp.float32)
        y = jnp.mean(xf, axis=-1, keepdims=True)          # (R, 1) global avg pool

        # k-tap channel conv: yc[r] = sum_t w[t] * y[r + t - pad] (zero padded).
        # Shifts via sublane roll (XLU); boundary/cross-sample taps are zeroed
        # by the precomputed masks baked into wm.  No MXU, O(R*k).
        yc = jnp.zeros_like(y)
        for t in range(k_size):                           # static, fully unrolled
            d = t - pad
            yt = y if d == 0 else pltpu.roll(y, shift=(-d) % R, axis=0)
            yc = yc + wm_ref[t] * yt

        gate = jax.nn.sigmoid(yc)                         # (R, 1)

        # Re-read the block for the gating pass (don't keep xf live across the
        # reduce); store in the input dtype.
        o_ref[...] = (x_ref[...].astype(jnp.float32) * gate).astype(o_ref.dtype)

    out2 = pl.pallas_call(
        eca_kernel,
        out_shape=jax.ShapeDtypeStruct((N * C, HW), dtype),
        grid_spec=pltpu.PrefetchScalarGridSpec(
            num_scalar_prefetch=0,
            grid=(N // bn,),
            in_specs=[pl.BlockSpec((R, HW), lambda i: (i, 0)),
                      pl.BlockSpec((k_size, R, 1), lambda i: (0, i, 0))],
            out_specs=pl.BlockSpec((R, HW), lambda i: (i, 0)),
        ),
        compiler_params=pltpu.CompilerParams(
            dimension_semantics=("parallel",)),
    )(x2, wm)

    return out2.reshape(N, C, H, W)


# --------------------------- pure-JAX reference ----------------------------- #

def reference_eca(x, w_eca, k_size=5):
    N, C, H, W = x.shape
    pad = (k_size - 1) // 2
    y = jnp.mean(x.astype(jnp.float32), axis=(2, 3))              # (N, C)
    y_pad = jnp.pad(y, ((0, 0), (pad, pad)))
    yc = sum(w_eca[t] * y_pad[:, t:t + C] for t in range(k_size))
    gate = jax.nn.sigmoid(yc)
    return (x.astype(jnp.float32) * gate[:, :, None, None]).astype(x.dtype)


# --------------------------------- main ------------------------------------ #

if __name__ == "__main__":
    key = jax.random.PRNGKey(0)
    kx, kw = jax.random.split(key, 2)

    N, C, H, W = 2, 4, 16, 16
    x = jax.random.normal(kx, (N, C, H, W), jnp.float32)
    # Conv1d(1, 1, kernel_size=5, bias=False) weight, flattened to (5,)
    w_eca = jax.random.normal(kw, (5,), jnp.float32) * 0.3

    out = eca_pallas(x, w_eca)
    out = jax.block_until_ready(out)

    ref = reference_eca(x, w_eca)
    np.testing.assert_allclose(np.asarray(out), np.asarray(ref),
                               rtol=1e-5, atol=1e-5)

    print("KERNEL_OK")
</pallas_src>

<mosaic_0001>
module attributes {stable_mosaic.version = 11 : i64} {
  func.func @eca_kernel(%arg0: i32, %arg1: memref<8x256xf32, #tpu.memory_space<vmem>>, %arg2: memref<5x8x1xf32, #tpu.memory_space<vmem>>, %arg3: memref<8x256xf32, #tpu.memory_space<vmem>>) attributes {dimension_semantics = [#tpu.dimension_semantics<parallel>], iteration_bounds = array<i64: 1>, scalar_prefetch = 0 : i64, scratch_operands = 0 : i64, tpu.core_type = #tpu.core_type<tc>, window_params = [{transform_indices = @transform_0, window_bounds = array<i64: 8, 256>}, {transform_indices = @transform_1, window_bounds = array<i64: 5, 8, 1>}, {transform_indices = @transform_2, window_bounds = array<i64: 8, 256>}]} {
    %c0 = arith.constant 0 : index
    %c0_0 = arith.constant 0 : index
    %0 = vector.load %arg1[%c0, %c0_0] : memref<8x256xf32, #tpu.memory_space<vmem>>, vector<8x256xf32>
    %cst = arith.constant dense<0.000000e+00> : vector<8xf32>
    %1 = vector.multi_reduction <add>, %0, %cst [1] : vector<8x256xf32> to vector<8xf32>
    %2 = vector.shape_cast %1 : vector<8xf32> to vector<8x1xf32>
    %cst_1 = arith.constant 2.560000e+02 : f32
    %3 = vector.broadcast %cst_1 : f32 to vector<8x1xf32>
    %4 = arith.divf %2, %3 : vector<8x1xf32>
    %cst_2 = arith.constant 0.000000e+00 : f32
    %5 = vector.broadcast %cst_2 : f32 to vector<8x1xf32>
    %c2_i32 = arith.constant 2 : i32
    %6 = tpu.dynamic_rotate %4 by %c2_i32 dim 0 : vector<8x1xf32>, i32 -> vector<8x1xf32>
    %c0_3 = arith.constant 0 : index
    %c0_4 = arith.constant 0 : index
    %c0_5 = arith.constant 0 : index
    %7 = vector.load %arg2[%c0_3, %c0_4, %c0_5] : memref<5x8x1xf32, #tpu.memory_space<vmem>>, vector<1x8x1xf32>
    %8 = vector.shape_cast %7 : vector<1x8x1xf32> to vector<8x1xf32>
    %9 = arith.mulf %8, %6 : vector<8x1xf32>
    %10 = arith.addf %5, %9 : vector<8x1xf32>
    %c1_i32 = arith.constant 1 : i32
    %11 = tpu.dynamic_rotate %4 by %c1_i32 dim 0 : vector<8x1xf32>, i32 -> vector<8x1xf32>
    %c1 = arith.constant 1 : index
    %c0_6 = arith.constant 0 : index
    %c0_7 = arith.constant 0 : index
    %12 = vector.load %arg2[%c1, %c0_6, %c0_7] : memref<5x8x1xf32, #tpu.memory_space<vmem>>, vector<1x8x1xf32>
    %13 = vector.shape_cast %12 : vector<1x8x1xf32> to vector<8x1xf32>
    %14 = arith.mulf %13, %11 : vector<8x1xf32>
    %15 = arith.addf %10, %14 : vector<8x1xf32>
    %c2 = arith.constant 2 : index
    %c0_8 = arith.constant 0 : index
    %c0_9 = arith.constant 0 : index
    %16 = vector.load %arg2[%c2, %c0_8, %c0_9] : memref<5x8x1xf32, #tpu.memory_space<vmem>>, vector<1x8x1xf32>
    %17 = vector.shape_cast %16 : vector<1x8x1xf32> to vector<8x1xf32>
    %18 = arith.mulf %17, %4 : vector<8x1xf32>
    %19 = arith.addf %15, %18 : vector<8x1xf32>
    %c7_i32 = arith.constant 7 : i32
    %20 = tpu.dynamic_rotate %4 by %c7_i32 dim 0 : vector<8x1xf32>, i32 -> vector<8x1xf32>
    %c3 = arith.constant 3 : index
    %c0_10 = arith.constant 0 : index
    %c0_11 = arith.constant 0 : index
    %21 = vector.load %arg2[%c3, %c0_10, %c0_11] : memref<5x8x1xf32, #tpu.memory_space<vmem>>, vector<1x8x1xf32>
    %22 = vector.shape_cast %21 : vector<1x8x1xf32> to vector<8x1xf32>
    %23 = arith.mulf %22, %20 : vector<8x1xf32>
    %24 = arith.addf %19, %23 : vector<8x1xf32>
    %c6_i32 = arith.constant 6 : i32
    %25 = tpu.dynamic_rotate %4 by %c6_i32 dim 0 : vector<8x1xf32>, i32 -> vector<8x1xf32>
    %c4 = arith.constant 4 : index
    %c0_12 = arith.constant 0 : index
    %c0_13 = arith.constant 0 : index
    %26 = vector.load %arg2[%c4, %c0_12, %c0_13] : memref<5x8x1xf32, #tpu.memory_space<vmem>>, vector<1x8x1xf32>
    %27 = vector.shape_cast %26 : vector<1x8x1xf32> to vector<8x1xf32>
    %28 = arith.mulf %27, %25 : vector<8x1xf32>
    %29 = arith.addf %24, %28 : vector<8x1xf32>
    %30 = arith.negf %29 : vector<8x1xf32>
    %31 = math.exp %30 : vector<8x1xf32>
    %cst_14 = arith.constant 1.000000e+00 : f32
    %32 = vector.broadcast %cst_14 : f32 to vector<8x1xf32>
    %33 = arith.addf %32, %31 : vector<8x1xf32>
    %34 = arith.divf %32, %33 : vector<8x1xf32>
    %c0_15 = arith.constant 0 : index
    %c0_16 = arith.constant 0 : index
    %35 = vector.load %arg1[%c0_15, %c0_16] : memref<8x256xf32, #tpu.memory_space<vmem>>, vector<8x256xf32>
    %36 = vector.broadcast %34 : vector<8x1xf32> to vector<8x256xf32>
    %37 = arith.mulf %35, %36 : vector<8x256xf32>
    %c0_17 = arith.constant 0 : index
    %c0_18 = arith.constant 0 : index
    %38 = vector.load %arg3[%c0_17, %c0_18] : memref<8x256xf32, #tpu.memory_space<vmem>>, vector<8x256xf32>
    tpu.vector_store %arg3[%c0_17, %c0_18], %37 {strides = array<i32>} : memref<8x256xf32, #tpu.memory_space<vmem>>, vector<8x256xf32>,
    return
  }
  func.func @transform_0(%arg0: i32) -> (i32, i32) {
    %c0_i32 = arith.constant 0 : i32
    %c0_i32_0 = arith.constant 0 : i32
    return %arg0, %c0_i32 : i32, i32
  }
  func.func @transform_1(%arg0: i32) -> (i32, i32, i32) {
    %c0_i32 = arith.constant 0 : i32
    %c0_i32_0 = arith.constant 0 : i32
    %c0_i32_1 = arith.constant 0 : i32
    return %c0_i32, %arg0, %c0_i32_0 : i32, i32, i32
  }
  func.func @transform_2(%arg0: i32) -> (i32, i32) {
    %c0_i32 = arith.constant 0 : i32
    %c0_i32_0 = arith.constant 0 : i32
    return %arg0, %c0_i32 : i32, i32
  }
}

</mosaic_0001>

<llo_original>
// kernel: tpu_custom_call.1
$region0: #{tpu_custom_call.1}
  #allocation0 [shape = 'u32[]', space=smem, size = 0x4, offset = 0x4, fixed_abs, tag = 'smem constant byte address 0x4 - core index']
  #allocation1 [shape = 'u32[144,128]{1,0:T(1,128)}', space=vmem, size = 0x12000, scoped, tag = 'internal scratch']
  %s0 = inlined_call_operand.vmem [shape: f32[8,256], index: 0, kind: input, shape index: {}]
  %s1 = inlined_call_operand.vmem [shape: f32[5,8,1], index: 1, kind: input, shape index: {}]
  %s2 = inlined_call_operand.hbm [shape: f32[8,256], index: 2, kind: output, shape index: {}]
  %s3 = sld [smem:[#allocation0]]
  $region18: #{tpu_custom_call.1} parent=0
    _
  %s5 = ssub.s32 1, %s3
  %s6 = scalar_select 0, %s5, %s3
  $region1: #{tpu_custom_call.1} parent=0
    #allocation2 [shape = 'u8[8192]{0}', space=vmem, size = 0x2000, scoped, tag = 'output window, operand 0, single buffered']
    #allocation3 [shape = 's32[1]{0}', space=sflag, size = 0x4, scoped, tag = 'scoped memory for tpu_custom_call.1']
    %7 = vsyncpa [#allocation3], 0
    // Predicated region
    $region2: #{tpu_custom_call.1} parent=1 // pred_check
      _
    $region3: #{tpu_custom_call.1} parent=1 // pred_check_branch
      %9 = sbr.rel (0) target = $region5
    $region4: #{tpu_custom_call.1} parent=1 // pred_region
      _
    $region5: #{tpu_custom_call.1} parent=1 // pred_fallthru
      _
    // Predicated region
    $region6: #{tpu_custom_call.1} parent=1 // pred_check
      _
    $region7: #{tpu_custom_call.1} parent=1 // pred_check_branch
      %11 = sbr.rel (0) target = $region9
    $region8: #{tpu_custom_call.1} parent=1 // pred_region
      _
    $region9: #{tpu_custom_call.1} parent=1 // pred_fallthru
      _
    %v12 = vld [vmem:[%s0] sm:$0xff]
    %v13 = vld [vmem:[%s0 + $0x8] sm:$0xff]
    %v14 = vadd.f32 %v12, %v13
    %15 = vadd.xlane.f32.xlu0 %v14
    %v16 = vpop.xlane.xlu0 %15
    %v17 = vrcp.pop 256.0
    %v18 = vmul.f32 %v16, %v17
    %v19 = vrot.slane %v18, 6
    %v20 = vld [vmem:[%s1] sm:$0xff]
    %v21 = vmul.f32 %v20, %v19
    %v22 = vadd.f32 %v21, 0.0
    %v23 = vrot.slane %v18, 7
    %s24 = scalar_lea.vmem %s1, 8
    %v25 = vld [vmem:[%s24] sm:$0xff]
    %v26 = vmul.f32 %v25, %v23
    %v27 = vadd.f32 %v22, %v26
    %s28 = scalar_lea.vmem %s1, 16
    %v29 = vld [vmem:[%s28] sm:$0xff]
    %v30 = vmul.f32 %v29, %v18
    %v31 = vadd.f32 %v27, %v30
    %v32 = vrot.slane %v18, 1
    %s33 = scalar_lea.vmem %s1, 24
    %v34 = vld [vmem:[%s33] sm:$0xff]
    %v35 = vmul.f32 %v34, %v32
    %v36 = vadd.f32 %v31, %v35
    %v37 = vrot.slane %v18, 2
    %s38 = scalar_lea.vmem %s1, 32
    %v39 = vld [vmem:[%s38] sm:$0xff]
    %v40 = vmul.f32 %v39, %v37
    %v41 = vadd.f32 %v36, %v40
    %v42 = vxor.u32 %v41, 2147483648
    %v43 = vmul.f32 %v42, 1.442695
    %v44 = vpow.pop %v43
    %v45 = vadd.f32 %v44, 1.0
    %v46 = vrcp.pop %v45
    %v47 = vmul.f32 1.0, %v46
    %49 = vset.pattern.permute.xlu0 0
    %50 = vperm.xlu0 %49, %v47
    %v51 = vpop.permute.xlu0 %50
    %v53 = vmul.f32 %v12, %v51
    %v54 = vmul.f32 %v13, %v51
    %55 = vst [vmem:[#allocation2] sm:$0xff] %v53
    %56 = vst [vmem:[#allocation2 + $0x8] sm:$0xff] %v54
    // Predicated region
    $region10: #{tpu_custom_call.1} parent=1 // pred_check
      _
    $region11: #{tpu_custom_call.1} parent=1 // pred_check_branch
      %58 = sbr.rel (0) target = $region13
    $region12: #{tpu_custom_call.1} parent=1 // pred_region
      %s60 = ssub.s32 256, 256
      %61 = vsyncadd [#allocation3], %s60
      %s63 = sshll.u32 [#allocation2], 4
      %s64 = int_to_ptr.vmem [resolvable:$true] %s63
      %66 = dma.vmem_to_hbm [thread:$0]  %s64, 256, %s2, [#allocation3]
    $region13: #{tpu_custom_call.1} parent=1 // pred_fallthru
      _
    // Predicated region
    $region14: #{tpu_custom_call.1} parent=1 // pred_check
      _
    $region15: #{tpu_custom_call.1} parent=1 // pred_check_branch
      %68 = sbr.rel (0) target = $region17
    $region16: #{tpu_custom_call.1} parent=1 // pred_region
      %69 = dma.done [#allocation3], 256
    $region17: #{tpu_custom_call.1} parent=1 // pred_fallthru
      _
    %70 = vsyncpa [#allocation3], 1

</llo_original>
